<compile_context>
chip_gen: v5e
topology: v5e:2x2
jax: 0.10.0
libtpu: 0.0.40
codegen_flags: <defaults>
</compile_context>

<pallas_src>
import functools

import jax
import jax.numpy as jnp
from jax.experimental import pallas as pl
from jax.experimental.pallas import tpu as pltpu

_NEG_SLOPE = 0.3
_SUBLANE = 8


def _net_fc_kernel(x_ref, w_ref, b_ref, o_ref):
    # One batch tile: (TM, K) @ (K, C) on the MXU with f32 accumulate,
    # bias add + LeakyReLU(0.3) on the VPU in f32, store (TM, C).
    y = jnp.dot(x_ref[...], w_ref[...], preferred_element_type=jnp.float32)
    y = y + b_ref[...].astype(jnp.float32)        # (TM, C) + (1, C) broadcast
    o_ref[...] = jnp.where(y >= 0, y, _NEG_SLOPE * y).astype(o_ref.dtype)


@functools.partial(jax.jit, static_argnames=("block_m",))
def net_fc_forward(x, w_t, b, *, block_m=4096):
    """LeakyReLU(0.3)(x @ w_t + b)

    x:   (B, input_size)       float32 or bfloat16
    w_t: (input_size, C)       float32 or bfloat16 (transposed nn.Linear weight)
    b:   (C,) or (1, C)        float32
    Output is always float32 (module semantics).

    block_m: batch tile.  4096 is a good default on v5e/v6e; pass 8192 on v7x
    (keep it such that B > block_m when you want both TensorCores busy).
    """
    assert block_m % _SUBLANE == 0
    B, K = x.shape
    C = w_t.shape[1]
    b2 = jnp.reshape(b, (1, C))

    if B <= block_m:
        # Fast path: single grid step, block == full array (always legal),
        # no padding, no ragged-tile masking, no extra wrapper ops.
        TM = B
    else:
        # Tiled path: TM is sublane-aligned; last tile may be ragged and is
        # masked by Pallas (garbage OOB rows are computed but never stored).
        TM = block_m

    grid = (pl.cdiv(B, TM),)

    itemsize_x = jnp.dtype(x.dtype).itemsize
    itemsize_w = jnp.dtype(w_t.dtype).itemsize

    # TODO(synk): for maximum HBM savings on v5e/v6e/v7x, have the producer
    # hand over x (and w_t) already in bf16; this wrapper intentionally does
    # not cast (an in-wrapper .astype would add its own HBM pass).
    out = pl.pallas_call(
        _net_fc_kernel,
        out_shape=jax.ShapeDtypeStruct((B, C), jnp.float32),
        grid=grid,
        in_specs=[
            pl.BlockSpec((TM, K), lambda i: (i, 0)),   # stream x tiles
            pl.BlockSpec((K, C), lambda i: (0, 0)),    # weight VMEM-resident
            pl.BlockSpec((1, C), lambda i: (0, 0)),    # bias VMEM-resident
        ],
        out_specs=pl.BlockSpec((TM, C), lambda i: (i, 0)),
        compiler_params=pltpu.CompilerParams(
            # No reduction across grid steps -> batch axis is embarrassingly
            # parallel; lets v7x shard the grid across its two TensorCores.
            dimension_semantics=("parallel",),
        ),
        cost_estimate=pl.CostEstimate(
            flops=2 * B * K * C,
            transcendentals=0,
            bytes_accessed=(B * K * itemsize_x
                            + K * C * itemsize_w
                            + C * 4
                            + B * C * 4),
        ),
    )(x, w_t, b2)

    return out


def reference_forward(x, w_t, b):
    y = x.astype(jnp.float32) @ w_t.astype(jnp.float32) + b.reshape(1, -1)
    return jnp.where(y >= 0, y, _NEG_SLOPE * y)


if __name__ == "__main__":
    # Small shapes consistent with the module: input_size=32, num_classes=16.
    input_size, num_classes = 32, 16

    key = jax.random.PRNGKey(0)
    kx, kw, kb, kx2 = jax.random.split(key, 4)

    bound = 1.0 / (input_size ** 0.5)
    # nn.Linear shapes: W (num_classes, input_size), b (num_classes,)
    w = jax.random.uniform(kw, (num_classes, input_size),
                           minval=-bound, maxval=bound, dtype=jnp.float32)
    b = jax.random.uniform(kb, (num_classes,),
                           minval=-bound, maxval=bound, dtype=jnp.float32)
    w_t = w.T  # (input_size, num_classes)

    # Case 1: tiny batch -> fast path, single grid step, zero padding/masking.
    batch = 8
    x = jax.random.normal(kx, (batch, input_size), dtype=jnp.float32)
    out = net_fc_forward(x, w_t, b)
    jax.block_until_ready(out)
    ref = reference_forward(x, w_t, b)
    assert out.shape == (batch, num_classes)
    assert jnp.allclose(out, ref, atol=1e-5, rtol=1e-5)

    # Case 2: non-multiple batch on the default (single-step, TM=B) path.
    batch2 = 600
    x2 = jax.random.normal(kx2, (batch2, input_size), dtype=jnp.float32)
    out2 = net_fc_forward(x2, w_t, b)
    jax.block_until_ready(out2)
    ref2 = reference_forward(x2, w_t, b)
    assert out2.shape == (batch2, num_classes)
    assert jnp.allclose(out2, ref2, atol=1e-5, rtol=1e-5)

    # Case 3: force the multi-step tiled path with a ragged, masked last tile
    # (600 rows with TM=128 -> grid=5, last tile 88 valid rows).
    out3 = net_fc_forward(x2, w_t, b, block_m=128)
    jax.block_until_ready(out3)
    assert out3.shape == (batch2, num_classes)
    assert jnp.allclose(out3, ref2, atol=1e-5, rtol=1e-5)

    # Case 4: bf16 inputs from the "producer" (halved x/w HBM stream); the
    # kernel still accumulates and applies bias/LeakyReLU in f32.
    x_bf16 = x2.astype(jnp.bfloat16)
    w_bf16 = w_t.astype(jnp.bfloat16)
    out4 = net_fc_forward(x_bf16, w_bf16, b)
    jax.block_until_ready(out4)
    assert out4.shape == (batch2, num_classes)
    assert jnp.allclose(out4, ref2, atol=5e-2, rtol=5e-2)

    print("KERNEL_OK")
</pallas_src>

<mosaic_0001>
module attributes {stable_mosaic.version = 11 : i64} {
  func.func @_net_fc_kernel(%arg0: i32, %arg1: memref<8x32xf32, #tpu.memory_space<vmem>>, %arg2: memref<32x16xf32, #tpu.memory_space<vmem>>, %arg3: memref<1x16xf32, #tpu.memory_space<vmem>>, %arg4: memref<8x16xf32, #tpu.memory_space<vmem>>) attributes {dimension_semantics = [#tpu.dimension_semantics<parallel>], iteration_bounds = array<i64: 1>, scalar_prefetch = 0 : i64, scratch_operands = 0 : i64, tpu.core_type = #tpu.core_type<tc>, window_params = [{transform_indices = @transform_0, window_bounds = array<i64: 8, 32>}, {pipeline_mode = #tpu.pipeline_mode<synchronous>, transform_indices = @transform_1, window_bounds = array<i64: 32, 16>}, {pipeline_mode = #tpu.pipeline_mode<synchronous>, transform_indices = @transform_2, window_bounds = array<i64: 1, 16>}, {transform_indices = @transform_3, window_bounds = array<i64: 8, 16>}]} {
    %c0 = arith.constant 0 : index
    %c0_0 = arith.constant 0 : index
    %0 = vector.load %arg1[%c0, %c0_0] : memref<8x32xf32, #tpu.memory_space<vmem>>, vector<8x32xf32>
    %c0_1 = arith.constant 0 : index
    %c0_2 = arith.constant 0 : index
    %1 = vector.load %arg2[%c0_1, %c0_2] : memref<32x16xf32, #tpu.memory_space<vmem>>, vector<32x16xf32>
    %cst = arith.constant dense<0.000000e+00> : vector<8x16xf32>
    %2 = tpu.matmul %0, %1, %cst {dimension_numbers = #tpu.dot_dimension_numbers<[1], [0], [0], [1], [0, 0, 1, 1], [], []>} : vector<8x32xf32>, vector<32x16xf32>, vector<8x16xf32> -> vector<8x16xf32>
    %c0_3 = arith.constant 0 : index
    %c0_4 = arith.constant 0 : index
    %3 = vector.load %arg3[%c0_3, %c0_4] : memref<1x16xf32, #tpu.memory_space<vmem>>, vector<1x16xf32>
    %4 = vector.broadcast %3 : vector<1x16xf32> to vector<8x16xf32>
    %5 = arith.addf %2, %4 : vector<8x16xf32>
    %cst_5 = arith.constant 0.000000e+00 : f32
    %6 = vector.broadcast %cst_5 : f32 to vector<8x16xf32>
    %7 = arith.cmpf oge, %5, %6 : vector<8x16xf32>
    %cst_6 = arith.constant 3.000000e-01 : f32
    %8 = vector.broadcast %cst_6 : f32 to vector<8x16xf32>
    %9 = arith.mulf %8, %5 : vector<8x16xf32>
    %10 = arith.select %7, %5, %9 : vector<8x16xi1>, vector<8x16xf32>
    %c0_7 = arith.constant 0 : index
    %c0_8 = arith.constant 0 : index
    %11 = vector.load %arg4[%c0_7, %c0_8] : memref<8x16xf32, #tpu.memory_space<vmem>>, vector<8x16xf32>
    tpu.vector_store %arg4[%c0_7, %c0_8], %10 {strides = array<i32>} : memref<8x16xf32, #tpu.memory_space<vmem>>, vector<8x16xf32>,
    return
  }
  func.func @transform_0(%arg0: i32) -> (i32, i32) {
    %c0_i32 = arith.constant 0 : i32
    %c0_i32_0 = arith.constant 0 : i32
    return %arg0, %c0_i32 : i32, i32
  }
  func.func @transform_1(%arg0: i32) -> (i32, i32) {
    %c0_i32 = arith.constant 0 : i32
    %c0_i32_0 = arith.constant 0 : i32
    %c0_i32_1 = arith.constant 0 : i32
    return %c0_i32, %c0_i32_0 : i32, i32
  }
  func.func @transform_2(%arg0: i32) -> (i32, i32) {
    %c0_i32 = arith.constant 0 : i32
    %c0_i32_0 = arith.constant 0 : i32
    %c0_i32_1 = arith.constant 0 : i32
    return %c0_i32, %c0_i32_0 : i32, i32
  }
  func.func @transform_3(%arg0: i32) -> (i32, i32) {
    %c0_i32 = arith.constant 0 : i32
    %c0_i32_0 = arith.constant 0 : i32
    return %arg0, %c0_i32 : i32, i32
  }
}

</mosaic_0001>

<llo_original>
// kernel: net_fc_forward.1
$region0: #{net_fc_forward.1}
  #allocation0 [shape = 'u32[]', space=smem, size = 0x4, offset = 0x4, fixed_abs, tag = 'smem constant byte address 0x4 - core index']
  #allocation1 [shape = 'u32[72,128]{1,0:T(1,128)}', space=vmem, size = 0x9000, scoped, tag = 'internal scratch']
  %s0 = inlined_call_operand.vmem [shape: f32[8,32], index: 0, kind: input, shape index: {}]
  %s1 = inlined_call_operand.vmem [shape: f32[32,16], index: 1, kind: input, shape index: {}]
  %s2 = inlined_call_operand.vmem [shape: f32[1,16], index: 2, kind: input, shape index: {}]
  %s3 = inlined_call_operand.hbm [shape: f32[8,16], index: 3, kind: output, shape index: {}]
  %s4 = sld [smem:[#allocation0]]
  $region22: #{net_fc_forward.1} parent=0
    _
  %s6 = ssub.s32 1, %s4
  %s7 = scalar_select 0, %s6, %s4
  $region1: #{net_fc_forward.1} parent=0
    #allocation2 [shape = 'u8[4096]{0}', space=vmem, size = 0x1000, scoped, tag = 'output window, operand 0, single buffered']
    #allocation3 [shape = 's32[1]{0}', space=sflag, size = 0x4, scoped, tag = 'scoped memory for net_fc_forward.1']
    %8 = vsyncpa [#allocation3], 0
    // Predicated region
    $region2: #{net_fc_forward.1} parent=1 // pred_check
      _
    $region3: #{net_fc_forward.1} parent=1 // pred_check_branch
      %10 = sbr.rel (0) target = $region5
    $region4: #{net_fc_forward.1} parent=1 // pred_region
      _
    $region5: #{net_fc_forward.1} parent=1 // pred_fallthru
      _
    // Predicated region
    $region6: #{net_fc_forward.1} parent=1 // pred_check
      _
    $region7: #{net_fc_forward.1} parent=1 // pred_check_branch
      %12 = sbr.rel (0) target = $region9
    $region8: #{net_fc_forward.1} parent=1 // pred_region
      _
    $region9: #{net_fc_forward.1} parent=1 // pred_fallthru
      _
    // Predicated region
    $region10: #{net_fc_forward.1} parent=1 // pred_check
      _
    $region11: #{net_fc_forward.1} parent=1 // pred_check_branch
      %14 = sbr.rel (0) target = $region13
    $region12: #{net_fc_forward.1} parent=1 // pred_region
      _
    $region13: #{net_fc_forward.1} parent=1 // pred_fallthru
      _
    %v15 = vld [vmem:[%s0] sm:$0xff]
    %v16 = vld [vmem:[%s1] sm:$0xff]
    %v17 = vld [vmem:[%s1 + $0x8] sm:$0xff]
    %v18 = vld [vmem:[%s1 + $0x10] sm:$0xff]
    %v19 = vld [vmem:[%s1 + $0x18] sm:$0xff]
    %v20 = vld [vmem:[%s2] sm:$0x1]
    %v22 = vperm.slane %v20, 0
    %vm24 = vcmask 261120
    %v26 = vsel %vm24, %v15, 0
    %28 = vmatpush.msra.mxu0 0.0
    %29 = vmatpush.msra.mxu0 0.0
    %30 = vmatpush.msra.mxu0 0.0
    %31 = vmatpush.msra.mxu0 0.0
    %32 = vmatpush.msra.mxu0 0.0
    %33 = vmatpush.msra.mxu0 0.0
    %34 = vmatpush.msra.mxu0 0.0
    %35 = vmatpush.msra.mxu0 0.0
    %36 = vmatpush.msra.mxu0 0.0
    %37 = vmatpush.msra.mxu0 0.0
    %38 = vmatpush.msra.mxu0 0.0
    %39 = vmatpush.msra.mxu0 0.0
    %40 = vmatpush.msra.mxu0 %v19
    %41 = vmatpush.msra.mxu0 %v18
    %42 = vmatpush.msra.mxu0 %v17
    %43 = vmatpush.msra.mxu0 %v16
    %44 = vmatmul.f32.gmra.mxu0 %v26
    %v45 = vpop.f32.mrf.mxu0
    %v46 = vadd.f32 %v22, %v45
    %47 = vdwg.mxu0
    %vm48 = vcmp.ge.f32.partialorder %v46, 0.0
    %v49 = vmul.f32 %v46, 0.3
    %v50 = vsel %vm48, %v46, %v49
    %vm51 = vcmask 130048
    %52 = vst.msk [vmem:[#allocation2] sm:$0xff] %vm51, %v50
    // Predicated region
    $region14: #{net_fc_forward.1} parent=1 // pred_check
      _
    $region15: #{net_fc_forward.1} parent=1 // pred_check_branch
      %54 = sbr.rel (0) target = $region17
    $region16: #{net_fc_forward.1} parent=1 // pred_region
      %56 = vsyncadd [#allocation3], 0
      %s58 = sshll.u32 [#allocation2], 4
      %s59 = int_to_ptr.vmem [resolvable:$true] %s58
      %s60 = sshll.u32 %s3, 4
      %s61 = int_to_ptr.hbm [resolvable:$true] %s60
      %63 = dma.vmem_to_hbm [thread:$0]  %s59, 128, %s61, [#allocation3]
    $region17: #{net_fc_forward.1} parent=1 // pred_fallthru
      _
    // Predicated region
    $region18: #{net_fc_forward.1} parent=1 // pred_check
      _
    $region19: #{net_fc_forward.1} parent=1 // pred_check_branch
      %65 = sbr.rel (0) target = $region21
    $region20: #{net_fc_forward.1} parent=1 // pred_region
      %67 = dma.done [#allocation3], 128
    $region21: #{net_fc_forward.1} parent=1 // pred_fallthru
      _
    %68 = vsyncpa [#allocation3], 1

</llo_original>
